<compile_context>
chip_gen: v5e
topology: v5e:2x2
jax: 0.10.0
libtpu: 0.0.40
codegen_flags: <defaults>
</compile_context>

<pallas_src>
import functools

import jax
import jax.numpy as jnp
from jax.experimental import pallas as pl
from jax.experimental.pallas import tpu as pltpu


def cross_attention_kernel(x_ref, ctx_ref, wq_ref, wk_ref, wv_ref, wo_ref, bo_ref,
                           out_ref, *, scale, heads):
    dt = x_ref.dtype                       # native dtype fed to the MXU (bf16 stays bf16)
    x2 = x_ref[0]                          # (N, Dq)
    c2 = ctx_ref[0]                        # (M, Dc)
    n = x2.shape[0]
    dq = out_ref.shape[-1]

    acc = jnp.zeros((n, dq), jnp.float32)  # f32 accumulator for the output projection

    # heads is small and static -> unrolled Python loop; no lane-axis slicing anywhere.
    for h in range(heads):
        q_h = jnp.dot(x2, wq_ref[h], preferred_element_type=jnp.float32)   # (N, dh)
        k_h = jnp.dot(c2, wk_ref[h], preferred_element_type=jnp.float32)   # (M, dh)
        v_h = jnp.dot(c2, wv_ref[h], preferred_element_type=jnp.float32)   # (M, dh)

        sim = jnp.dot(q_h.astype(dt), k_h.astype(dt).T,
                      preferred_element_type=jnp.float32) * scale          # (N, M), f32

        # numerically stable softmax along the context axis (f32)
        sim = sim - jnp.max(sim, axis=-1, keepdims=True)
        p = jnp.exp(sim)
        attn = p / jnp.sum(p, axis=-1, keepdims=True)

        o_h = jnp.dot(attn.astype(dt), v_h.astype(dt),
                      preferred_element_type=jnp.float32)                  # (N, dh)

        # per-head slice of the output projection; accumulate in f32
        acc = acc + jnp.dot(o_h.astype(dt), wo_ref[h],
                            preferred_element_type=jnp.float32)            # (N, Dq)

    # TODO(synk): training-mode Dropout in to_out (random mask + 1/(1-p) rescale via
    # pltpu.prng_*) not implemented; eval-mode identity semantics used.
    out_ref[0] = (acc + bo_ref[...].astype(jnp.float32)).astype(out_ref.dtype)


def cross_attention(x, context, wq, wk, wv, wo, bo, *, heads, dim_head):
    """x: (B, N, Dq); context: (B, M, Dc) or None; weights in (in, out) layout."""
    if context is None:
        context = x
    B, N, Dq = x.shape
    _, M, Dc = context.shape
    scale = dim_head ** (-0.5)

    # Split projection weights per head so the kernel never slices the lane axis.
    wq_h = wq.reshape(Dq, heads, dim_head).transpose(1, 0, 2)   # (H, Dq, dh)
    wk_h = wk.reshape(Dc, heads, dim_head).transpose(1, 0, 2)   # (H, Dc, dh)
    wv_h = wv.reshape(Dc, heads, dim_head).transpose(1, 0, 2)   # (H, Dc, dh)
    wo_h = wo.reshape(heads, dim_head, Dq)                      # (H, dh, Dq)
    bo_2d = bo.reshape(1, Dq)

    kernel = functools.partial(cross_attention_kernel, scale=scale, heads=heads)

    return pl.pallas_call(
        kernel,
        out_shape=jax.ShapeDtypeStruct((B, N, Dq), x.dtype),
        grid_spec=pltpu.PrefetchScalarGridSpec(
            num_scalar_prefetch=0,
            grid=(B,),
            in_specs=[
                pl.BlockSpec((1, N, Dq), lambda b: (b, 0, 0)),             # x
                pl.BlockSpec((1, M, Dc), lambda b: (b, 0, 0)),             # context
                pl.BlockSpec((heads, Dq, dim_head), lambda b: (0, 0, 0)),  # Wq (per head)
                pl.BlockSpec((heads, Dc, dim_head), lambda b: (0, 0, 0)),  # Wk (per head)
                pl.BlockSpec((heads, Dc, dim_head), lambda b: (0, 0, 0)),  # Wv (per head)
                pl.BlockSpec((heads, dim_head, Dq), lambda b: (0, 0, 0)),  # Wo (per head)
                pl.BlockSpec((1, Dq), lambda b: (0, 0)),                   # bo
            ],
            out_specs=pl.BlockSpec((1, N, Dq), lambda b: (b, 0, 0)),
        ),
        compiler_params=pltpu.CompilerParams(
            dimension_semantics=("parallel",)),
    )(x, context, wq_h, wk_h, wv_h, wo_h, bo_2d)


def reference(x, context, wq, wk, wv, wo, bo, *, heads, dim_head):
    """Pure-JAX reference mirroring the PyTorch forward (eval mode)."""
    if context is None:
        context = x
    B, N, _ = x.shape
    scale = dim_head ** (-0.5)
    q = x @ wq
    k = context @ wk
    v = context @ wv

    def split(t):
        b, l, _ = t.shape
        return t.reshape(b, l, heads, dim_head).transpose(0, 2, 1, 3)      # (B, H, L, dh)

    qh, kh, vh = split(q), split(k), split(v)
    sim = jnp.einsum('bhid,bhjd->bhij', qh, kh) * scale
    attn = jax.nn.softmax(sim, axis=-1)
    out = jnp.einsum('bhij,bhjd->bhid', attn, vh)
    out = out.transpose(0, 2, 1, 3).reshape(B, N, heads * dim_head)
    return out @ wo + bo


if __name__ == "__main__":
    B, N, M = 2, 16, 8
    query_dim = 128          # multiple of 128 -> lane-dense output stores
    context_dim = 64
    heads, dim_head = 2, 64
    inner_dim = heads * dim_head

    key = jax.random.PRNGKey(0)
    k = jax.random.split(key, 8)
    x = jax.random.normal(k[0], (B, N, query_dim), dtype=jnp.float32)
    context = jax.random.normal(k[1], (B, M, context_dim), dtype=jnp.float32)

    # Synthetic params (stored (in, out) so forward is x @ W; matches nn.Linear math).
    wq = jax.random.normal(k[2], (query_dim, inner_dim), jnp.float32) * 0.05
    wk = jax.random.normal(k[3], (context_dim, inner_dim), jnp.float32) * 0.05
    wv = jax.random.normal(k[4], (context_dim, inner_dim), jnp.float32) * 0.05
    wo = jax.random.normal(k[5], (inner_dim, query_dim), jnp.float32) * 0.05
    bo = jax.random.normal(k[6], (query_dim,), jnp.float32) * 0.05

    out = cross_attention(x, context, wq, wk, wv, wo, bo,
                          heads=heads, dim_head=dim_head)
    out = jax.block_until_ready(out)

    ref = reference(x, context, wq, wk, wv, wo, bo, heads=heads, dim_head=dim_head)
    assert out.shape == (B, N, query_dim)
    assert jnp.allclose(out, ref, atol=1e-3, rtol=1e-3), "mismatch vs reference"

    print("KERNEL_OK")
</pallas_src>

<mosaic_0001>
module attributes {stable_mosaic.version = 11 : i64} {
  func.func @cross_attention_kernel(%arg0: i32, %arg1: memref<1x16x128xf32, #tpu.memory_space<vmem>>, %arg2: memref<1x8x64xf32, #tpu.memory_space<vmem>>, %arg3: memref<2x128x64xf32, #tpu.memory_space<vmem>>, %arg4: memref<2x64x64xf32, #tpu.memory_space<vmem>>, %arg5: memref<2x64x64xf32, #tpu.memory_space<vmem>>, %arg6: memref<2x64x128xf32, #tpu.memory_space<vmem>>, %arg7: memref<1x128xf32, #tpu.memory_space<vmem>>, %arg8: memref<1x16x128xf32, #tpu.memory_space<vmem>>) attributes {dimension_semantics = [#tpu.dimension_semantics<parallel>], iteration_bounds = array<i64: 2>, scalar_prefetch = 0 : i64, scratch_operands = 0 : i64, tpu.core_type = #tpu.core_type<tc>, window_params = [{transform_indices = @transform_0, window_bounds = array<i64: 1, 16, 128>}, {transform_indices = @transform_1, window_bounds = array<i64: 1, 8, 64>}, {pipeline_mode = #tpu.pipeline_mode<synchronous>, transform_indices = @transform_2, window_bounds = array<i64: 2, 128, 64>}, {pipeline_mode = #tpu.pipeline_mode<synchronous>, transform_indices = @transform_3, window_bounds = array<i64: 2, 64, 64>}, {pipeline_mode = #tpu.pipeline_mode<synchronous>, transform_indices = @transform_4, window_bounds = array<i64: 2, 64, 64>}, {pipeline_mode = #tpu.pipeline_mode<synchronous>, transform_indices = @transform_5, window_bounds = array<i64: 2, 64, 128>}, {pipeline_mode = #tpu.pipeline_mode<synchronous>, transform_indices = @transform_6, window_bounds = array<i64: 1, 128>}, {transform_indices = @transform_7, window_bounds = array<i64: 1, 16, 128>}]} {
    %c0 = arith.constant 0 : index
    %c0_0 = arith.constant 0 : index
    %c0_1 = arith.constant 0 : index
    %0 = vector.load %arg1[%c0, %c0_0, %c0_1] : memref<1x16x128xf32, #tpu.memory_space<vmem>>, vector<1x16x128xf32>
    %1 = vector.shape_cast %0 : vector<1x16x128xf32> to vector<16x128xf32>
    %c0_2 = arith.constant 0 : index
    %c0_3 = arith.constant 0 : index
    %c0_4 = arith.constant 0 : index
    %2 = vector.load %arg2[%c0_2, %c0_3, %c0_4] : memref<1x8x64xf32, #tpu.memory_space<vmem>>, vector<1x8x64xf32>
    %3 = vector.shape_cast %2 : vector<1x8x64xf32> to vector<8x64xf32>
    %cst = arith.constant 0.000000e+00 : f32
    %4 = vector.broadcast %cst : f32 to vector<16x128xf32>
    %c0_5 = arith.constant 0 : index
    %c0_6 = arith.constant 0 : index
    %c0_7 = arith.constant 0 : index
    %5 = vector.load %arg3[%c0_5, %c0_6, %c0_7] : memref<2x128x64xf32, #tpu.memory_space<vmem>>, vector<1x128x64xf32>
    %6 = vector.shape_cast %5 : vector<1x128x64xf32> to vector<128x64xf32>
    %cst_8 = arith.constant dense<0.000000e+00> : vector<16x64xf32>
    %7 = tpu.matmul %1, %6, %cst_8 {dimension_numbers = #tpu.dot_dimension_numbers<[1], [0], [0], [1], [0, 0, 1, 1], [], []>} : vector<16x128xf32>, vector<128x64xf32>, vector<16x64xf32> -> vector<16x64xf32>
    %c0_9 = arith.constant 0 : index
    %c0_10 = arith.constant 0 : index
    %c0_11 = arith.constant 0 : index
    %8 = vector.load %arg4[%c0_9, %c0_10, %c0_11] : memref<2x64x64xf32, #tpu.memory_space<vmem>>, vector<1x64x64xf32>
    %9 = vector.shape_cast %8 : vector<1x64x64xf32> to vector<64x64xf32>
    %cst_12 = arith.constant dense<0.000000e+00> : vector<8x64xf32>
    %10 = tpu.matmul %3, %9, %cst_12 {dimension_numbers = #tpu.dot_dimension_numbers<[1], [0], [0], [1], [0, 0, 1, 1], [], []>} : vector<8x64xf32>, vector<64x64xf32>, vector<8x64xf32> -> vector<8x64xf32>
    %c0_13 = arith.constant 0 : index
    %c0_14 = arith.constant 0 : index
    %c0_15 = arith.constant 0 : index
    %11 = vector.load %arg5[%c0_13, %c0_14, %c0_15] : memref<2x64x64xf32, #tpu.memory_space<vmem>>, vector<1x64x64xf32>
    %12 = vector.shape_cast %11 : vector<1x64x64xf32> to vector<64x64xf32>
    %cst_16 = arith.constant dense<0.000000e+00> : vector<8x64xf32>
    %13 = tpu.matmul %3, %12, %cst_16 {dimension_numbers = #tpu.dot_dimension_numbers<[1], [0], [0], [1], [0, 0, 1, 1], [], []>} : vector<8x64xf32>, vector<64x64xf32>, vector<8x64xf32> -> vector<8x64xf32>
    %14 = tpu.transpose %10, [1, 0] : vector<8x64xf32> -> vector<64x8xf32>
    %cst_17 = arith.constant dense<0.000000e+00> : vector<16x8xf32>
    %15 = tpu.matmul %7, %14, %cst_17 {dimension_numbers = #tpu.dot_dimension_numbers<[1], [0], [0], [1], [0, 0, 1, 1], [], []>} : vector<16x64xf32>, vector<64x8xf32>, vector<16x8xf32> -> vector<16x8xf32>
    %cst_18 = arith.constant 1.250000e-01 : f32
    %16 = vector.broadcast %cst_18 : f32 to vector<16x8xf32>
    %17 = arith.mulf %15, %16 : vector<16x8xf32>
    %cst_19 = arith.constant dense<0xFF800000> : vector<16xf32>
    %18 = vector.multi_reduction <maximumf>, %17, %cst_19 [1] : vector<16x8xf32> to vector<16xf32>
    %19 = vector.shape_cast %18 : vector<16xf32> to vector<16x1xf32>
    %20 = vector.broadcast %19 : vector<16x1xf32> to vector<16x8xf32>
    %21 = arith.subf %17, %20 : vector<16x8xf32>
    %22 = math.exp %21 : vector<16x8xf32>
    %cst_20 = arith.constant dense<0.000000e+00> : vector<16xf32>
    %23 = vector.multi_reduction <add>, %22, %cst_20 [1] : vector<16x8xf32> to vector<16xf32>
    %24 = vector.shape_cast %23 : vector<16xf32> to vector<16x1xf32>
    %25 = vector.broadcast %24 : vector<16x1xf32> to vector<16x8xf32>
    %26 = arith.divf %22, %25 : vector<16x8xf32>
    %cst_21 = arith.constant dense<0.000000e+00> : vector<16x64xf32>
    %27 = tpu.matmul %26, %13, %cst_21 {dimension_numbers = #tpu.dot_dimension_numbers<[1], [0], [0], [1], [0, 0, 1, 1], [], []>} : vector<16x8xf32>, vector<8x64xf32>, vector<16x64xf32> -> vector<16x64xf32>
    %c0_22 = arith.constant 0 : index
    %c0_23 = arith.constant 0 : index
    %c0_24 = arith.constant 0 : index
    %28 = vector.load %arg6[%c0_22, %c0_23, %c0_24] : memref<2x64x128xf32, #tpu.memory_space<vmem>>, vector<1x64x128xf32>
    %29 = vector.shape_cast %28 : vector<1x64x128xf32> to vector<64x128xf32>
    %cst_25 = arith.constant dense<0.000000e+00> : vector<16x128xf32>
    %30 = tpu.matmul %27, %29, %cst_25 {dimension_numbers = #tpu.dot_dimension_numbers<[1], [0], [0], [1], [0, 0, 1, 1], [], []>} : vector<16x64xf32>, vector<64x128xf32>, vector<16x128xf32> -> vector<16x128xf32>
    %31 = arith.addf %4, %30 : vector<16x128xf32>
    %c1 = arith.constant 1 : index
    %c0_26 = arith.constant 0 : index
    %c0_27 = arith.constant 0 : index
    %32 = vector.load %arg3[%c1, %c0_26, %c0_27] : memref<2x128x64xf32, #tpu.memory_space<vmem>>, vector<1x128x64xf32>
    %33 = vector.shape_cast %32 : vector<1x128x64xf32> to vector<128x64xf32>
    %cst_28 = arith.constant dense<0.000000e+00> : vector<16x64xf32>
    %34 = tpu.matmul %1, %33, %cst_28 {dimension_numbers = #tpu.dot_dimension_numbers<[1], [0], [0], [1], [0, 0, 1, 1], [], []>} : vector<16x128xf32>, vector<128x64xf32>, vector<16x64xf32> -> vector<16x64xf32>
    %c1_29 = arith.constant 1 : index
    %c0_30 = arith.constant 0 : index
    %c0_31 = arith.constant 0 : index
    %35 = vector.load %arg4[%c1_29, %c0_30, %c0_31] : memref<2x64x64xf32, #tpu.memory_space<vmem>>, vector<1x64x64xf32>
    %36 = vector.shape_cast %35 : vector<1x64x64xf32> to vector<64x64xf32>
    %cst_32 = arith.constant dense<0.000000e+00> : vector<8x64xf32>
    %37 = tpu.matmul %3, %36, %cst_32 {dimension_numbers = #tpu.dot_dimension_numbers<[1], [0], [0], [1], [0, 0, 1, 1], [], []>} : vector<8x64xf32>, vector<64x64xf32>, vector<8x64xf32> -> vector<8x64xf32>
    %c1_33 = arith.constant 1 : index
    %c0_34 = arith.constant 0 : index
    %c0_35 = arith.constant 0 : index
    %38 = vector.load %arg5[%c1_33, %c0_34, %c0_35] : memref<2x64x64xf32, #tpu.memory_space<vmem>>, vector<1x64x64xf32>
    %39 = vector.shape_cast %38 : vector<1x64x64xf32> to vector<64x64xf32>
    %cst_36 = arith.constant dense<0.000000e+00> : vector<8x64xf32>
    %40 = tpu.matmul %3, %39, %cst_36 {dimension_numbers = #tpu.dot_dimension_numbers<[1], [0], [0], [1], [0, 0, 1, 1], [], []>} : vector<8x64xf32>, vector<64x64xf32>, vector<8x64xf32> -> vector<8x64xf32>
    %41 = tpu.transpose %37, [1, 0] : vector<8x64xf32> -> vector<64x8xf32>
    %cst_37 = arith.constant dense<0.000000e+00> : vector<16x8xf32>
    %42 = tpu.matmul %34, %41, %cst_37 {dimension_numbers = #tpu.dot_dimension_numbers<[1], [0], [0], [1], [0, 0, 1, 1], [], []>} : vector<16x64xf32>, vector<64x8xf32>, vector<16x8xf32> -> vector<16x8xf32>
    %cst_38 = arith.constant 1.250000e-01 : f32
    %43 = vector.broadcast %cst_38 : f32 to vector<16x8xf32>
    %44 = arith.mulf %42, %43 : vector<16x8xf32>
    %cst_39 = arith.constant dense<0xFF800000> : vector<16xf32>
    %45 = vector.multi_reduction <maximumf>, %44, %cst_39 [1] : vector<16x8xf32> to vector<16xf32>
    %46 = vector.shape_cast %45 : vector<16xf32> to vector<16x1xf32>
    %47 = vector.broadcast %46 : vector<16x1xf32> to vector<16x8xf32>
    %48 = arith.subf %44, %47 : vector<16x8xf32>
    %49 = math.exp %48 : vector<16x8xf32>
    %cst_40 = arith.constant dense<0.000000e+00> : vector<16xf32>
    %50 = vector.multi_reduction <add>, %49, %cst_40 [1] : vector<16x8xf32> to vector<16xf32>
    %51 = vector.shape_cast %50 : vector<16xf32> to vector<16x1xf32>
    %52 = vector.broadcast %51 : vector<16x1xf32> to vector<16x8xf32>
    %53 = arith.divf %49, %52 : vector<16x8xf32>
    %cst_41 = arith.constant dense<0.000000e+00> : vector<16x64xf32>
    %54 = tpu.matmul %53, %40, %cst_41 {dimension_numbers = #tpu.dot_dimension_numbers<[1], [0], [0], [1], [0, 0, 1, 1], [], []>} : vector<16x8xf32>, vector<8x64xf32>, vector<16x64xf32> -> vector<16x64xf32>
    %c1_42 = arith.constant 1 : index
    %c0_43 = arith.constant 0 : index
    %c0_44 = arith.constant 0 : index
    %55 = vector.load %arg6[%c1_42, %c0_43, %c0_44] : memref<2x64x128xf32, #tpu.memory_space<vmem>>, vector<1x64x128xf32>
    %56 = vector.shape_cast %55 : vector<1x64x128xf32> to vector<64x128xf32>
    %cst_45 = arith.constant dense<0.000000e+00> : vector<16x128xf32>
    %57 = tpu.matmul %54, %56, %cst_45 {dimension_numbers = #tpu.dot_dimension_numbers<[1], [0], [0], [1], [0, 0, 1, 1], [], []>} : vector<16x64xf32>, vector<64x128xf32>, vector<16x128xf32> -> vector<16x128xf32>
    %58 = arith.addf %31, %57 : vector<16x128xf32>
    %c0_46 = arith.constant 0 : index
    %c0_47 = arith.constant 0 : index
    %59 = vector.load %arg7[%c0_46, %c0_47] : memref<1x128xf32, #tpu.memory_space<vmem>>, vector<1x128xf32>
    %60 = vector.broadcast %59 : vector<1x128xf32> to vector<16x128xf32>
    %61 = arith.addf %58, %60 : vector<16x128xf32>
    %c0_48 = arith.constant 0 : index
    %c0_49 = arith.constant 0 : index
    %c0_50 = arith.constant 0 : index
    %62 = vector.load %arg8[%c0_48, %c0_49, %c0_50] : memref<1x16x128xf32, #tpu.memory_space<vmem>>, vector<1x16x128xf32>
    %63 = vector.shape_cast %62 : vector<1x16x128xf32> to vector<16x128xf32>
    %64 = vector.shape_cast %61 : vector<16x128xf32> to vector<1x16x128xf32>
    tpu.vector_store %arg8[%c0_48, %c0_49, %c0_50], %64 {strides = array<i32>} : memref<1x16x128xf32, #tpu.memory_space<vmem>>, vector<1x16x128xf32>,
    return
  }
  func.func @transform_0(%arg0: i32) -> (i32, i32, i32) {
    %c0_i32 = arith.constant 0 : i32
    %c0_i32_0 = arith.constant 0 : i32
    %c0_i32_1 = arith.constant 0 : i32
    return %arg0, %c0_i32, %c0_i32_0 : i32, i32, i32
  }
  func.func @transform_1(%arg0: i32) -> (i32, i32, i32) {
    %c0_i32 = arith.constant 0 : i32
    %c0_i32_0 = arith.constant 0 : i32
    %c0_i32_1 = arith.constant 0 : i32
    return %arg0, %c0_i32, %c0_i32_0 : i32, i32, i32
  }
  func.func @transform_2(%arg0: i32) -> (i32, i32, i32) {
    %c0_i32 = arith.constant 0 : i32
    %c0_i32_0 = arith.constant 0 : i32
    %c0_i32_1 = arith.constant 0 : i32
    %c0_i32_2 = arith.constant 0 : i32
    return %c0_i32, %c0_i32_0, %c0_i32_1 : i32, i32, i32
  }
  func.func @transform_3(%arg0: i32) -> (i32, i32, i32) {
    %c0_i32 = arith.constant 0 : i32
    %c0_i32_0 = arith.constant 0 : i32
    %c0_i32_1 = arith.constant 0 : i32
    %c0_i32_2 = arith.constant 0 : i32
    return %c0_i32, %c0_i32_0, %c0_i32_1 : i32, i32, i32
  }
  func.func @transform_4(%arg0: i32) -> (i32, i32, i32) {
    %c0_i32 = arith.constant 0 : i32
    %c0_i32_0 = arith.constant 0 : i32
    %c0_i32_1 = arith.constant 0 : i32
    %c0_i32_2 = arith.constant 0 : i32
    return %c0_i32, %c0_i32_0, %c0_i32_1 : i32, i32, i32
  }
  func.func @transform_5(%arg0: i32) -> (i32, i32, i32) {
    %c0_i32 = arith.constant 0 : i32
    %c0_i32_0 = arith.constant 0 : i32
    %c0_i32_1 = arith.constant 0 : i32
    %c0_i32_2 = arith.constant 0 : i32
    return %c0_i32, %c0_i32_0, %c0_i32_1 : i32, i32, i32
  }
  func.func @transform_6(%arg0: i32) -> (i32, i32) {
    %c0_i32 = arith.constant 0 : i32
    %c0_i32_0 = arith.constant 0 : i32
    %c0_i32_1 = arith.constant 0 : i32
    return %c0_i32, %c0_i32_0 : i32, i32
  }
  func.func @transform_7(%arg0: i32) -> (i32, i32, i32) {
    %c0_i32 = arith.constant 0 : i32
    %c0_i32_0 = arith.constant 0 : i32
    %c0_i32_1 = arith.constant 0 : i32
    return %arg0, %c0_i32, %c0_i32_0 : i32, i32, i32
  }
}

</mosaic_0001>

<llo_original>
// kernel: tpu_custom_call.1
$region0: #{tpu_custom_call.1}
  #allocation0 [shape = 'u32[]', space=smem, size = 0x4, offset = 0x4, fixed_abs, tag = 'smem constant byte address 0x4 - core index']
  #allocation1 [shape = 'u32[72,128]{1,0:T(1,128)}', space=vmem, size = 0x9000, scoped, tag = 'internal scratch']
  %s0 = inlined_call_operand.hbm [shape: f32[2,16,128], index: 0, kind: input, shape index: {}]
  %s1 = inlined_call_operand.hbm [shape: f32[2,8,64], index: 1, kind: input, shape index: {}]
  %s2 = inlined_call_operand.vmem [shape: f32[2,128,64], index: 2, kind: input, shape index: {}]
  %s3 = inlined_call_operand.vmem [shape: f32[2,64,64], index: 3, kind: input, shape index: {}]
  %s4 = inlined_call_operand.vmem [shape: f32[2,64,64], index: 4, kind: input, shape index: {}]
  %s5 = inlined_call_operand.vmem [shape: f32[2,64,128], index: 5, kind: input, shape index: {}]
  %s6 = inlined_call_operand.vmem [shape: f32[1,128], index: 6, kind: input, shape index: {}]
  %s7 = inlined_call_operand.hbm [shape: f32[2,16,128], index: 7, kind: output, shape index: {}]
  %s8 = sld [smem:[#allocation0]]
  $region69: #{tpu_custom_call.1} parent=0
    _
  %s10 = ssub.s32 1, %s8
  %s11 = scalar_select 0, %s10, %s8
  $region1: #{tpu_custom_call.1} parent=0
    #allocation2 [shape = 'u8[16384]{0}', space=vmem, size = 0x4000, scoped, tag = 'input window, operand 0']
    #allocation3 [shape = 's32[2]{0}', space=sflag, size = 0x8, scoped, tag = 'scoped memory for tpu_custom_call.1']
    #allocation4 [shape = 's32[2]{0}', space=sflag, size = 0x8, scoped, tag = 'scoped memory for tpu_custom_call.1']
    #allocation5 [shape = 'u8[8192]{0}', space=vmem, size = 0x2000, scoped, tag = 'input window, operand 1']
    #allocation6 [shape = 's32[2]{0}', space=sflag, size = 0x8, scoped, tag = 'scoped memory for tpu_custom_call.1']
    #allocation7 [shape = 'u8[16384]{0}', space=vmem, size = 0x4000, scoped, tag = 'output window, operand 0']
    %12 = vsyncpa [#allocation3], 0
    %s13 = scalar_lea.sflag [#allocation3], 1
    %14 = vsyncpa %s13, 0
    %15 = vsyncpa [#allocation6], 0
    %s16 = scalar_lea.sflag [#allocation6], 1
    %17 = vsyncpa %s16, 0
    %18 = vsyncpa [#allocation4], 0
    %s19 = scalar_lea.sflag [#allocation4], 1
    %20 = vsyncpa %s19, 0
    loop: start=0, step=1, limit=4
    $region2: #{tpu_custom_call.1} parent=1 // loop_pre_header
      _
    $region3: #{tpu_custom_call.1} parent=1 // loop_header
      %s22 = sphi 0, %s26
      %p23 = scmp.ge.s32.totalorder %s22, 4
      %s32 = sphi 0, %s34
      %s35 = sphi 0, %s32
      %s36 = sphi 0, %s35
      %s52 = sphi 0, %s36
      %s58 = sphi 0, %s60
      %s61 = sphi 0, %s58
      %s62 = sphi 0, %s61
      %s78 = sphi 0, %s62
      %s82 = sphi 0, %s82
      %s84 = sphi 0, %s82
      %s85 = sphi 0, %s84
      %s99 = sphi 0, %s85
      %s103 = sphi 0, %s103
      %s105 = sphi 0, %s103
      %s106 = sphi 0, %s105
      %s120 = sphi 0, %s106
      %s124 = sphi 0, %s124
      %s126 = sphi 0, %s124
      %s127 = sphi 0, %s126
      %s141 = sphi 0, %s127
      %s145 = sphi 0, %s145
      %s147 = sphi 0, %s145
      %s148 = sphi 0, %s147
      %s162 = sphi 0, %s148
      %s166 = sphi 0, %s166
      %s168 = sphi 0, %s166
      %s169 = sphi 0, %s168
      %s183 = sphi 0, %s169
      %s189 = sphi 0, %s191
      %s192 = sphi 0, %s189
      %s193 = sphi 0, %s192
      %s209 = sphi 0, %s193
    $region4: #{tpu_custom_call.1} parent=1 // loop_header_branch
      %25 = sbr.rel (%p23) target = $region8
    $region5: #{tpu_custom_call.1} parent=1 // loop_body
      %s27 = ssub.s32 %s22, 1
      %s28 = ssub.s32 %s22, 2
      %s29 = sadd.s32 %s22, 1
      %s30 = ssub.s32 %s22, %s29
      %p31 = scmp.eq.s32.totalorder %s30, 0
      %s33 = sadd.s32 %s32, 1
      %s34 = scalar_select %p31, %s32, %s33
      %p37 = pneg %p31
      %p38 = scmp.eq.s32.totalorder %s22, 1
      %p39 = por %p37, %p38
      %p40 = scmp.ne.s32.totalorder %s32, %s35
      %p41 = scmp.eq.s32.totalorder %s22, 0
      %p42 = por %p40, %p41
      %p43 = scmp.ne.s32.totalorder %s32, %s35
      %p44 = scmp.eq.s32.totalorder %s27, 1
      %p45 = por %p43, %p44
      %p46 = scmp.ne.s32.totalorder %s35, %s36
      %p47 = scmp.eq.s32.totalorder %s27, 0
      %p48 = por %p46, %p47
      %p49 = scmp.ne.s32.totalorder %s35, %s36
      %p50 = scmp.eq.s32.totalorder %s28, 1
      %p51 = por %p49, %p50
      %p53 = scmp.ne.s32.totalorder %s36, %s52
      %p54 = scmp.eq.s32.totalorder %s28, 0
      %p55 = por %p53, %p54
      %s56 = ssub.s32 %s22, %s29
      %p57 = scmp.eq.s32.totalorder %s56, 0
      %s59 = sadd.s32 %s58, 1
      %s60 = scalar_select %p57, %s58, %s59
      %p63 = pneg %p57
      %p64 = scmp.eq.s32.totalorder %s22, 1
      %p65 = por %p63, %p64
      %p66 = scmp.ne.s32.totalorder %s58, %s61
      %p67 = scmp.eq.s32.totalorder %s22, 0
      %p68 = por %p66, %p67
      %p69 = scmp.ne.s32.totalorder %s58, %s61
      %p70 = scmp.eq.s32.totalorder %s27, 1
      %p71 = por %p69, %p70
      %p72 = scmp.ne.s32.totalorder %s61, %s62
      %p73 = scmp.eq.s32.totalorder %s27, 0
      %p74 = por %p72, %p73
      %p75 = scmp.ne.s32.totalorder %s61, %s62
      %p76 = scmp.eq.s32.totalorder %s28, 1
      %p77 = por %p75, %p76
      %p79 = scmp.ne.s32.totalorder %s62, %s78
      %p80 = scmp.eq.s32.totalorder %s28, 0
      %p81 = por %p79, %p80
      %s83 = sadd.s32 %s82, 1
      %p86 = scmp.eq.s32.totalorder %s22, 1
      %p87 = scmp.ne.s32.totalorder %s82, %s84
      %p88 = scmp.eq.s32.totalorder %s22, 0
      %p89 = por %p87, %p88
      %p90 = scmp.ne.s32.totalorder %s82, %s84
      %p91 = scmp.eq.s32.totalorder %s27, 1
      %p92 = por %p90, %p91
      %p93 = scmp.ne.s32.totalorder %s84, %s85
      %p94 = scmp.eq.s32.totalorder %s27, 0
      %p95 = por %p93, %p94
      %p96 = scmp.ne.s32.totalorder %s84, %s85
      %p97 = scmp.eq.s32.totalorder %s28, 1
      %p98 = por %p96, %p97
      %p100 = scmp.ne.s32.totalorder %s85, %s99
      %p101 = scmp.eq.s32.totalorder %s28, 0
      %p102 = por %p100, %p101
      %s104 = sadd.s32 %s103, 1
      %p107 = scmp.eq.s32.totalorder %s22, 1
      %p108 = scmp.ne.s32.totalorder %s103, %s105
      %p109 = scmp.eq.s32.totalorder %s22, 0
      %p110 = por %p108, %p109
      %p111 = scmp.ne.s32.totalorder %s103, %s105
      %p112 = scmp.eq.s32.totalorder %s27, 1
      %p113 = por %p111, %p112
      %p114 = scmp.ne.s32.totalorder %s105, %s106
      %p115 = scmp.eq.s32.totalorder %s27, 0
      %p116 = por %p114, %p115
      %p117 = scmp.ne.s32.totalorder %s105, %s106
      %p118 = scmp.eq.s32.totalorder %s28, 1
      %p119 = por %p117, %p118
      %p121 = scmp.ne.s32.totalorder %s106, %s120
      %p122 = scmp.eq.s32.totalorder %s28, 0
      %p123 = por %p121, %p122
      %s125 = sadd.s32 %s124, 1
      %p128 = scmp.eq.s32.totalorder %s22, 1
      %p129 = scmp.ne.s32.totalorder %s124, %s126
      %p130 = scmp.eq.s32.totalorder %s22, 0
      %p131 = por %p129, %p130
      %p132 = scmp.ne.s32.totalorder %s124, %s126
      %p133 = scmp.eq.s32.totalorder %s27, 1
      %p134 = por %p132, %p133
      %p135 = scmp.ne.s32.totalorder %s126, %s127
      %p136 = scmp.eq.s32.totalorder %s27, 0
      %p137 = por %p135, %p136
      %p138 = scmp.ne.s32.totalorder %s126, %s127
      %p139 = scmp.eq.s32.totalorder %s28, 1
      %p140 = por %p138, %p139
      %p142 = scmp.ne.s32.totalorder %s127, %s141
      %p143 = scmp.eq.s32.totalorder %s28, 0
      %p144 = por %p142, %p143
      %s146 = sadd.s32 %s145, 1
      %p149 = scmp.eq.s32.totalorder %s22, 1
      %p150 = scmp.ne.s32.totalorder %s145, %s147
      %p151 = scmp.eq.s32.totalorder %s22, 0
      %p152 = por %p150, %p151
      %p153 = scmp.ne.s32.totalorder %s145, %s147
      %p154 = scmp.eq.s32.totalorder %s27, 1
      %p155 = por %p153, %p154
      %p156 = scmp.ne.s32.totalorder %s147, %s148
      %p157 = scmp.eq.s32.totalorder %s27, 0
      %p158 = por %p156, %p157
      %p159 = scmp.ne.s32.totalorder %s147, %s148
      %p160 = scmp.eq.s32.totalorder %s28, 1
      %p161 = por %p159, %p160
      %p163 = scmp.ne.s32.totalorder %s148, %s162
      %p164 = scmp.eq.s32.totalorder %s28, 0
      %p165 = por %p163, %p164
      %s167 = sadd.s32 %s166, 1
      %p170 = scmp.eq.s32.totalorder %s22, 1
      %p171 = scmp.ne.s32.totalorder %s166, %s168
      %p172 = scmp.eq.s32.totalorder %s22, 0
      %p173 = por %p171, %p172
      %p174 = scmp.ne.s32.totalorder %s166, %s168
      %p175 = scmp.eq.s32.totalorder %s27, 1
      %p176 = por %p174, %p175
      %p177 = scmp.ne.s32.totalorder %s168, %s169
      %p178 = scmp.eq.s32.totalorder %s27, 0
      %p179 = por %p177, %p178
      %p180 = scmp.ne.s32.totalorder %s168, %s169
      %p181 = scmp.eq.s32.totalorder %s28, 1
      %p182 = por %p180, %p181
      %p184 = scmp.ne.s32.totalorder %s169, %s183
      %p185 = scmp.eq.s32.totalorder %s28, 0
      %p186 = por %p184, %p185
      %s187 = ssub.s32 %s22, %s29
      %p188 = scmp.eq.s32.totalorder %s187, 0
      %s190 = sadd.s32 %s189, 1
      %s191 = scalar_select %p188, %s189, %s190
      %p194 = pneg %p188
      %p195 = scmp.eq.s32.totalorder %s22, 1
      %p196 = por %p194, %p195
      %p197 = scmp.ne.s32.totalorder %s189, %s192
      %p198 = scmp.eq.s32.totalorder %s22, 0
      %p199 = por %p197, %p198
      %p200 = scmp.ne.s32.totalorder %s189, %s192
      %p201 = scmp.eq.s32.totalorder %s27, 1
      %p202 = por %p200, %p201
      %p203 = scmp.ne.s32.totalorder %s192, %s193
      %p204 = scmp.eq.s32.totalorder %s27, 0
      %p205 = por %p203, %p204
      %p206 = scmp.ne.s32.totalorder %s192, %s193
      %p207 = scmp.eq.s32.totalorder %s28, 1
      %p208 = por %p206, %p207
      %p210 = scmp.ne.s32.totalorder %s193, %s209
      %p211 = scmp.eq.s32.totalorder %s28, 0
      %p212 = por %p210, %p211
      %p213 = scmp.le.s32.totalorder 1, %s22
      %p214 = scmp.lt.s32.totalorder %s22, 3
      %p215 = pnand %p213, %p214
      %p216 = pneg %p215
      // Predicated region
      $region9: #{tpu_custom_call.1} parent=5 // pred_check
        _
      $region10: #{tpu_custom_call.1} parent=5 // pred_check_branch
        %218 = sbr.rel (%p215) target = $region12
      $region11: #{tpu_custom_call.1} parent=5 // pred_region
        %s219 = ssub.s32 %s22, 1
        // Predicated region
        $region13: #{tpu_custom_call.1} parent=11 // pred_check
          %p220 = pneg %p95
        $region14: #{tpu_custom_call.1} parent=11 // pred_check_branch
          %222 = sbr.rel (%p220) target = $region16
        $region15: #{tpu_custom_call.1} parent=11 // pred_region
          _
        $region16: #{tpu_custom_call.1} parent=11 // pred_fallthru
          _
        // Predicated region
        $region17: #{tpu_custom_call.1} parent=11 // pred_check
          %p223 = pneg %p116
        $region18: #{tpu_custom_call.1} parent=11 // pred_check_branch
          %225 = sbr.rel (%p223) target = $region20
        $region19: #{tpu_custom_call.1} parent=11 // pred_region
          _
        $region20: #{tpu_custom_call.1} parent=11 // pred_fallthru
          _
        // Predicated region
        $region21: #{tpu_custom_call.1} parent=11 // pred_check
          %p226 = pneg %p137
        $region22: #{tpu_custom_call.1} parent=11 // pred_check_branch
          %228 = sbr.rel (%p226) target = $region24
        $region23: #{tpu_custom_call.1} parent=11 // pred_region
          _
        $region24: #{tpu_custom_call.1} parent=11 // pred_fallthru
          _
        // Predicated region
        $region25: #{tpu_custom_call.1} parent=11 // pred_check
          %p229 = pneg %p158
        $region26: #{tpu_custom_call.1} parent=11 // pred_check_branch
          %231 = sbr.rel (%p229) target = $region28
        $region27: #{tpu_custom_call.1} parent=11 // pred_region
          _
        $region28: #{tpu_custom_call.1} parent=11 // pred_fallthru
          _
        // Predicated region
        $region29: #{tpu_custom_call.1} parent=11 // pred_check
          %p232 = pneg %p179
        $region30: #{tpu_custom_call.1} parent=11 // pred_check_branch
          %234 = sbr.rel (%p232) target = $region32
        $region31: #{tpu_custom_call.1} parent=11 // pred_region
          _
        $region32: #{tpu_custom_call.1} parent=11 // pred_fallthru
          _
      $region12: #{tpu_custom_call.1} parent=5 // pred_fallthru
        _
      %p235 = scmp.lt.s32.totalorder %s22, 2
      // Predicated region
      $region33: #{tpu_custom_call.1} parent=5 // pred_check
        %p236 = pneg %p235
      $region34: #{tpu_custom_call.1} parent=5 // pred_check_branch
        %238 = sbr.rel (%p236) target = $region36
      $region35: #{tpu_custom_call.1} parent=5 // pred_region
        // Predicated region
        $region37: #{tpu_custom_call.1} parent=35 // pred_check
          %p239 = pneg %p42
        $region38: #{tpu_custom_call.1} parent=35 // pred_check_branch
          %241 = sbr.rel (%p239) target = $region40
        $region39: #{tpu_custom_call.1} parent=35 // pred_region
          %s242 = sand.u32 %s32, 1
          %s243 = scalar_lea.sflag [#allocation3], %s242
          %s244 = sand.u32 %s32, 1
          %s245 = smul.addr %s244, 16
          %s246 = scalar_lea.vmem [#allocation2], %s245
          %248 = vsyncadd %s243, 0
          %s249 = smul.addr %s22, 2
          %s250 = smul.addr %s249, 8
          %s251 = scalar_lea.hbm %s0, %s250
          %s252 = sshll.u32 %s251, 4
          %s253 = int_to_ptr.hbm [resolvable:$true] %s252
          %s254 = sshll.u32 %s246, 4
          %s255 = int_to_ptr.vmem [resolvable:$true] %s254
          %260 = dma.hbm_to_vmem [thread:$0]  %s253, 256, %s255, %s243, 128, 128, 8
        $region40: #{tpu_custom_call.1} parent=35 // pred_fallthru
          _
        // Predicated region
        $region41: #{tpu_custom_call.1} parent=35 // pred_check
          %p261 = pneg %p68
        $region42: #{tpu_custom_call.1} parent=35 // pred_check_branch
          %263 = sbr.rel (%p261) target = $region44
        $region43: #{tpu_custom_call.1} parent=35 // pred_region
          %s264 = sand.u32 %s58, 1
          %s265 = scalar_lea.sflag [#allocation6], %s264
          %s266 = sand.u32 %s58, 1
          %s267 = smul.addr %s266, 8
          %s268 = scalar_lea.vmem [#allocation5], %s267
          %270 = vsyncadd %s265, 0
          %s271 = smul.addr %s22, 8
          %s272 = scalar_lea.hbm %s1, %s271
          %s274 = sshll.u32 %s272, 4
          %s275 = int_to_ptr.hbm [resolvable:$true] %s274
          %s276 = sshll.u32 %s268, 4
          %s277 = int_to_ptr.vmem [resolvable:$true] %s276
          %279 = dma.hbm_to_vmem [thread:$0]  %s275, 128, %s277, %s265
        $region44: #{tpu_custom_call.1} parent=35 // pred_fallthru
          _
      $region36: #{tpu_custom_call.1} parent=5 // pred_fallthru
        _
      %p280 = scmp.le.s32.totalorder 1, %s22
      %p281 = scmp.lt.s32.totalorder %s22, 3
      %p282 = pnand %p280, %p281
      %p283 = pneg %p282
      // Predicated region
      $region45: #{tpu_custom_call.1} parent=5 // pred_check
        _
      $region46: #{tpu_custom_call.1} parent=5 // pred_check_branch
        %285 = sbr.rel (%p282) target = $region48
      $region47: #{tpu_custom_call.1} parent=5 // pred_region
        %s286 = ssub.s32 %s22, 1
        %s287 = sand.u32 %s35, 1
        %s288 = scalar_lea.sflag [#allocation3], %s287
        %s289 = sand.u32 %s35, 1
        %s290 = smul.addr %s289, 16
        %s291 = scalar_lea.vmem [#allocation2], %s290
        // Predicated region
        $region49: #{tpu_custom_call.1} parent=47 // pred_check
          %p292 = pneg %p48
        $region50: #{tpu_custom_call.1} parent=47 // pred_check_branch
          %294 = sbr.rel (%p292) target = $region52
        $region51: #{tpu_custom_call.1} parent=47 // pred_region
          %296 = dma.done %s288, 256
        $region52: #{tpu_custom_call.1} parent=47 // pred_fallthru
          _
        %s297 = sand.u32 %s61, 1
        %s298 = scalar_lea.sflag [#allocation6], %s297
        %s299 = sand.u32 %s61, 1
        %s300 = smul.addr %s299, 8
        %s301 = scalar_lea.vmem [#allocation5], %s300
        // Predicated region
        $region53: #{tpu_custom_call.1} parent=47 // pred_check
          %p302 = pneg %p74
        $region54: #{tpu_custom_call.1} parent=47 // pred_check_branch
          %304 = sbr.rel (%p302) target = $region56
        $region55: #{tpu_custom_call.1} parent=47 // pred_region
          %306 = dma.done %s298, 128
        $region56: #{tpu_custom_call.1} parent=47 // pred_fallthru
          _
        %s307 = sand.u32 %s35, 1
        %s308 = scalar_lea.sflag [#allocation3], %s307
        %s309 = sand.u32 %s35, 1
        %s310 = smul.addr %s309, 16
        %s311 = scalar_lea.vmem [#allocation2], %s310
        %p312 = pneg %p48
        %p313 = pneg %p45
        %s314 = sand.u32 %s61, 1
        %s315 = scalar_lea.sflag [#allocation6], %s314
        %s316 = sand.u32 %s61, 1
        %s317 = smul.addr %s316, 8
        %s318 = scalar_lea.vmem [#allocation5], %s317
        %p319 = pneg %p74
        %p320 = pneg %p71
        %p321 = pneg %p95
        %p322 = pneg %p92
        %p323 = pneg %p116
        %p324 = pneg %p113
        %p325 = pneg %p137
        %p326 = pneg %p134
        %p327 = pneg %p158
        %p328 = pneg %p155
        %p329 = pneg %p179
        %p330 = pneg %p176
        %p331 = pneg %p205
        %p332 = pneg %p202
        %s333 = sand.u32 %s192, 1
        %s334 = scalar_lea.sflag [#allocation4], %s333
        %s335 = sand.u32 %s192, 1
        %s336 = smul.addr %s335, 16
        %s337 = scalar_lea.vmem [#allocation7], %s336
        %v338 = vld [vmem:[%s291] sm:$0xff]
        %v339 = vld [vmem:[%s291 + $0x8] sm:$0xff]
        %v340 = vld [vmem:[%s301] sm:$0xff]
        %v341 = vld [vmem:[%s2] sm:$0xff]
        %v342 = vld [vmem:[%s2 + $0x8] sm:$0xff]
        %v343 = vld [vmem:[%s2 + $0x10] sm:$0xff]
        %v344 = vld [vmem:[%s2 + $0x18] sm:$0xff]
        %v345 = vld [vmem:[%s2 + $0x20] sm:$0xff]
        %v346 = vld [vmem:[%s2 + $0x28] sm:$0xff]
        %v347 = vld [vmem:[%s2 + $0x30] sm:$0xff]
        %v348 = vld [vmem:[%s2 + $0x38] sm:$0xff]
        %v349 = vld [vmem:[%s2 + $0x40] sm:$0xff]
        %v350 = vld [vmem:[%s2 + $0x48] sm:$0xff]
        %v351 = vld [vmem:[%s2 + $0x50] sm:$0xff]
        %v352 = vld [vmem:[%s2 + $0x58] sm:$0xff]
        %v353 = vld [vmem:[%s2 + $0x60] sm:$0xff]
        %v354 = vld [vmem:[%s2 + $0x68] sm:$0xff]
        %v355 = vld [vmem:[%s2 + $0x70] sm:$0xff]
        %v356 = vld [vmem:[%s2 + $0x78] sm:$0xff]
        %357 = vmatpush.msra.mxu0 %v356
        %358 = vmatpush.msra.mxu0 %v355
        %359 = vmatpush.msra.mxu0 %v354
        %360 = vmatpush.msra.mxu0 %v353
        %361 = vmatpush.msra.mxu0 %v352
        %362 = vmatpush.msra.mxu0 %v351
        %363 = vmatpush.msra.mxu0 %v350
        %364 = vmatpush.msra.mxu0 %v349
        %365 = vmatpush.msra.mxu0 %v348
        %366 = vmatpush.msra.mxu0 %v347
        %367 = vmatpush.msra.mxu0 %v346
        %368 = vmatpush.msra.mxu0 %v345
        %369 = vmatpush.msra.mxu0 %v344
        %370 = vmatpush.msra.mxu0 %v343
        %371 = vmatpush.msra.mxu0 %v342
        %372 = vmatpush.msra.mxu0 %v341
        %373 = vmatmul.f32.gmra.mxu0 %v338
        %v374 = vpop.f32.mrf.mxu0
        %v375 = vadd.f32 0.0, %v374
        %376 = vmatmul.f32.gmra.mxu0 %v339
        %v377 = vpop.f32.mrf.mxu0
        %v378 = vadd.f32 0.0, %v377
        %379 = vdwg.mxu0
        %v380 = vld [vmem:[%s3] sm:$0xff]
        %v381 = vld [vmem:[%s3 + $0x8] sm:$0xff]
        %v382 = vld [vmem:[%s3 + $0x10] sm:$0xff]
        %v383 = vld [vmem:[%s3 + $0x18] sm:$0xff]
        %v384 = vld [vmem:[%s3 + $0x20] sm:$0xff]
        %v385 = vld [vmem:[%s3 + $0x28] sm:$0xff]
        %v386 = vld [vmem:[%s3 + $0x30] sm:$0xff]
        %v387 = vld [vmem:[%s3 + $0x38] sm:$0xff]
        %vm388 = vcmask 523264
        %v390 = vsel %vm388, %v340, 0
        %392 = vmatpush.msra.mxu0 0.0
        %393 = vmatpush.msra.mxu0 0.0
        %394 = vmatpush.msra.mxu0 0.0
        %395 = vmatpush.msra.mxu0 0.0
        %396 = vmatpush.msra.mxu0 0.0
        %397 = vmatpush.msra.mxu0 0.0
        %398 = vmatpush.msra.mxu0 0.0
        %399 = vmatpush.msra.mxu0 0.0
        %400 = vmatpush.msra.mxu0 %v387
        %401 = vmatpush.msra.mxu0 %v386
        %402 = vmatpush.msra.mxu0 %v385
        %403 = vmatpush.msra.mxu0 %v384
        %404 = vmatpush.msra.mxu0 %v383
        %405 = vmatpush.msra.mxu0 %v382
        %406 = vmatpush.msra.mxu0 %v381
        %407 = vmatpush.msra.mxu0 %v380
        %408 = vmatmul.f32.gmra.mxu0 %v390
        %v409 = vpop.f32.mrf.mxu0
        %v410 = vadd.f32 0.0, %v409
        %411 = vdwg.mxu0
        %v412 = vld [vmem:[%s4] sm:$0xff]
        %v413 = vld [vmem:[%s4 + $0x8] sm:$0xff]
        %v414 = vld [vmem:[%s4 + $0x10] sm:$0xff]
        %v415 = vld [vmem:[%s4 + $0x18] sm:$0xff]
        %v416 = vld [vmem:[%s4 + $0x20] sm:$0xff]
        %v417 = vld [vmem:[%s4 + $0x28] sm:$0xff]
        %v418 = vld [vmem:[%s4 + $0x30] sm:$0xff]
        %v419 = vld [vmem:[%s4 + $0x38] sm:$0xff]
        %420 = vmatpush.msra.mxu0 0.0
        %421 = vmatpush.msra.mxu0 0.0
        %422 = vmatpush.msra.mxu0 0.0
        %423 = vmatpush.msra.mxu0 0.0
        %424 = vmatpush.msra.mxu0 0.0
        %425 = vmatpush.msra.mxu0 0.0
        %426 = vmatpush.msra.mxu0 0.0
        %427 = vmatpush.msra.mxu0 0.0
        %428 = vmatpush.msra.mxu0 %v419
        %429 = vmatpush.msra.mxu0 %v418
        %430 = vmatpush.msra.mxu0 %v417
        %431 = vmatpush.msra.mxu0 %v416
        %432 = vmatpush.msra.mxu0 %v415
        %433 = vmatpush.msra.mxu0 %v414
        %434 = vmatpush.msra.mxu0 %v413
        %435 = vmatpush.msra.mxu0 %v412
        %436 = vmatmul.f32.gmra.mxu0 %v390
        %v437 = vpop.f32.mrf.mxu0
        %v438 = vadd.f32 0.0, %v437
        %439 = vdwg.mxu0
        %v441 = vsel %vm388, %v375, 0
        %v444 = vsel %vm388, %v378, 0
        %v447 = vsel %vm388, %v410, 0
        %449 = vmatpush.xpose.msra.mxu0 0.0
        %450 = vmatpush.xpose.msra.mxu0 0.0
        %451 = vmatpush.xpose.msra.mxu0 0.0
        %452 = vmatpush.xpose.msra.mxu0 0.0
        %453 = vmatpush.xpose.msra.mxu0 0.0
        %454 = vmatpush.xpose.msra.mxu0 0.0
        %455 = vmatpush.xpose.msra.mxu0 0.0
        %456 = vmatpush.xpose.msra.mxu0 0.0
        %457 = vmatpush.xpose.msra.mxu0 0.0
        %458 = vmatpush.xpose.msra.mxu0 0.0
        %459 = vmatpush.xpose.msra.mxu0 0.0
        %460 = vmatpush.xpose.msra.mxu0 0.0
        %461 = vmatpush.xpose.msra.mxu0 0.0
        %462 = vmatpush.xpose.msra.mxu0 0.0
        %463 = vmatpush.xpose.msra.mxu0 0.0
        %464 = vmatpush.xpose.msra.mxu0 %v447
        %465 = vmatmul.f32.gmra.mxu0 %v441
        %v466 = vpop.f32.mrf.mxu0
        %v467 = vadd.f32 0.0, %v466
        %468 = vmatmul.f32.gmra.mxu0 %v444
        %v469 = vpop.f32.mrf.mxu0
        %v470 = vadd.f32 0.0, %v469
        %471 = vdwg.mxu0
        %v472 = vmul.f32 %v467, 0.125
        %v473 = vmul.f32 %v470, 0.125
        %vm474 = vcmask 64512
        %v475 = vsel %vm474, %v472, -inf
        %476 = vmax.xlane.f32.xlu0 %v475
        %v477 = vpop.xlane.xlu0 %476
        %v478 = vsel %vm474, %v473, -inf
        %479 = vmax.xlane.f32.xlu0 %v478
        %v480 = vpop.xlane.xlu0 %479
        %v481 = vsub.f32 %v472, %v477
        %v482 = vsub.f32 %v473, %v480
        %v483 = vmul.f32 %v481, 1.442695
        %v484 = vpow.pop %v483
        %v485 = vmul.f32 %v482, 1.442695
        %v486 = vpow.pop %v485
        %v487 = vsel %vm474, %v484, 0.0
        %488 = vadd.xlane.f32.xlu0 %v487
        %v489 = vpop.xlane.xlu0 %488
        %v490 = vsel %vm474, %v486, 0.0
        %491 = vadd.xlane.f32.xlu0 %v490
        %v492 = vpop.xlane.xlu0 %491
        %v493 = vrcp.pop %v489
        %v494 = vmul.f32 %v489, %v493
        %v495 = vsub.f32 1.0, %v494
        %v496 = vmul.f32 %v493, %v495
        %v497 = vadd.f32 %v493, %v496
        %vm498 = vweird.f32 %v489
        %vm499 = vweird.f32 %v493
        %vm500 = vmor %vm498, %vm499
        %v501 = vsel %vm500, %v493, %v497
        %v502 = vand.u32 2147483647, %v489
        %vm503 = vcmp.eq.f32.partialorder %v502, 8.507059e+37
        %v504 = vand.u32 %v489, 2147483648
        %v505 = vor.u32 1.1754944e-38, %v504
        %v506 = vsel %vm503, %v505, %v501
        %v507 = vmul.f32 %v484, %v506
        %v508 = vrcp.pop %v492
        %v509 = vmul.f32 %v492, %v508
        %v510 = vsub.f32 1.0, %v509
        %v511 = vmul.f32 %v508, %v510
        %v512 = vadd.f32 %v508, %v511
        %vm513 = vweird.f32 %v492
        %vm514 = vweird.f32 %v508
        %vm515 = vmor %vm513, %vm514
        %v516 = vsel %vm515, %v508, %v512
        %v517 = vand.u32 2147483647, %v492
        %vm518 = vcmp.eq.f32.partialorder %v517, 8.507059e+37
        %v519 = vand.u32 %v492, 2147483648
        %v520 = vor.u32 1.1754944e-38, %v519
        %v521 = vsel %vm518, %v520, %v516
        %v522 = vmul.f32 %v486, %v521
        %v524 = vsel %vm474, %v507, 0
        %v527 = vsel %vm474, %v522, 0
        %529 = vmatpush.msra.mxu0 0.0
        %530 = vmatpush.msra.mxu0 0.0
        %531 = vmatpush.msra.mxu0 0.0
        %532 = vmatpush.msra.mxu0 0.0
        %533 = vmatpush.msra.mxu0 0.0
        %534 = vmatpush.msra.mxu0 0.0
        %535 = vmatpush.msra.mxu0 0.0
        %536 = vmatpush.msra.mxu0 0.0
        %537 = vmatpush.msra.mxu0 0.0
        %538 = vmatpush.msra.mxu0 0.0
        %539 = vmatpush.msra.mxu0 0.0
        %540 = vmatpush.msra.mxu0 0.0
        %541 = vmatpush.msra.mxu0 0.0
        %542 = vmatpush.msra.mxu0 0.0
        %543 = vmatpush.msra.mxu0 0.0
        %544 = vmatpush.msra.mxu0 %v438
        %545 = vmatmul.f32.gmra.mxu0 %v524
        %v546 = vpop.f32.mrf.mxu0
        %v547 = vadd.f32 0.0, %v546
        %548 = vmatmul.f32.gmra.mxu0 %v527
        %v549 = vpop.f32.mrf.mxu0
        %v550 = vadd.f32 0.0, %v549
        %551 = vdwg.mxu0
        %v552 = vld [vmem:[%s5] sm:$0xff]
        %v553 = vld [vmem:[%s5 + $0x8] sm:$0xff]
        %v554 = vld [vmem:[%s5 + $0x10] sm:$0xff]
        %v555 = vld [vmem:[%s5 + $0x18] sm:$0xff]
        %v556 = vld [vmem:[%s5 + $0x20] sm:$0xff]
        %v557 = vld [vmem:[%s5 + $0x28] sm:$0xff]
        %v558 = vld [vmem:[%s5 + $0x30] sm:$0xff]
        %v559 = vld [vmem:[%s5 + $0x38] sm:$0xff]
        %s560 = scalar_lea.vmem %s2, 128
        %v561 = vld [vmem:[%s560] sm:$0xff]
        %v562 = vld [vmem:[%s560 + $0x8] sm:$0xff]
        %v563 = vld [vmem:[%s560 + $0x10] sm:$0xff]
        %v564 = vld [vmem:[%s560 + $0x18] sm:$0xff]
        %v565 = vld [vmem:[%s560 + $0x20] sm:$0xff]
        %v566 = vld [vmem:[%s560 + $0x28] sm:$0xff]
        %v567 = vld [vmem:[%s560 + $0x30] sm:$0xff]
        %v568 = vld [vmem:[%s560 + $0x38] sm:$0xff]
        %v569 = vld [vmem:[%s560 + $0x40] sm:$0xff]
        %v570 = vld [vmem:[%s560 + $0x48] sm:$0xff]
        %v571 = vld [vmem:[%s560 + $0x50] sm:$0xff]
        %v572 = vld [vmem:[%s560 + $0x58] sm:$0xff]
        %v573 = vld [vmem:[%s560 + $0x60] sm:$0xff]
        %v574 = vld [vmem:[%s560 + $0x68] sm:$0xff]
        %v575 = vld [vmem:[%s560 + $0x70] sm:$0xff]
        %v576 = vld [vmem:[%s560 + $0x78] sm:$0xff]
        %577 = vmatpush.msra.mxu0 %v576
        %578 = vmatpush.msra.mxu0 %v575
        %579 = vmatpush.msra.mxu0 %v574
        %580 = vmatpush.msra.mxu0 %v573
        %581 = vmatpush.msra.mxu0 %v572
        %582 = vmatpush.msra.mxu0 %v571
        %583 = vmatpush.msra.mxu0 %v570
        %584 = vmatpush.msra.mxu0 %v569
        %585 = vmatpush.msra.mxu0 %v568
        %586 = vmatpush.msra.mxu0 %v567
        %587 = vmatpush.msra.mxu0 %v566
        %588 = vmatpush.msra.mxu0 %v565
        %589 = vmatpush.msra.mxu0 %v564
        %590 = vmatpush.msra.mxu0 %v563
        %591 = vmatpush.msra.mxu0 %v562
        %592 = vmatpush.msra.mxu0 %v561
        %593 = vmatmul.f32.gmra.mxu0 %v338
        %v594 = vpop.f32.mrf.mxu0
        %v595 = vadd.f32 0.0, %v594
        %596 = vmatmul.f32.gmra.mxu0 %v339
        %v597 = vpop.f32.mrf.mxu0
        %v598 = vadd.f32 0.0, %v597
        %599 = vdwg.mxu0
        %s600 = scalar_lea.vmem %s3, 64
        %v601 = vld [vmem:[%s600] sm:$0xff]
        %v602 = vld [vmem:[%s600 + $0x8] sm:$0xff]
        %v603 = vld [vmem:[%s600 + $0x10] sm:$0xff]
        %v604 = vld [vmem:[%s600 + $0x18] sm:$0xff]
        %v605 = vld [vmem:[%s600 + $0x20] sm:$0xff]
        %v606 = vld [vmem:[%s600 + $0x28] sm:$0xff]
        %v607 = vld [vmem:[%s600 + $0x30] sm:$0xff]
        %v608 = vld [vmem:[%s600 + $0x38] sm:$0xff]
        %609 = vmatpush.msra.mxu0 0.0
        %610 = vmatpush.msra.mxu0 0.0
        %611 = vmatpush.msra.mxu0 0.0
        %612 = vmatpush.msra.mxu0 0.0
        %613 = vmatpush.msra.mxu0 0.0
        %614 = vmatpush.msra.mxu0 0.0
        %615 = vmatpush.msra.mxu0 0.0
        %616 = vmatpush.msra.mxu0 0.0
        %617 = vmatpush.msra.mxu0 %v608
        %618 = vmatpush.msra.mxu0 %v607
        %619 = vmatpush.msra.mxu0 %v606
        %620 = vmatpush.msra.mxu0 %v605
        %621 = vmatpush.msra.mxu0 %v604
        %622 = vmatpush.msra.mxu0 %v603
        %623 = vmatpush.msra.mxu0 %v602
        %624 = vmatpush.msra.mxu0 %v601
        %625 = vmatmul.f32.gmra.mxu0 %v390
        %v626 = vpop.f32.mrf.mxu0
        %v627 = vadd.f32 0.0, %v626
        %628 = vdwg.mxu0
        %s629 = scalar_lea.vmem %s4, 64
        %v630 = vld [vmem:[%s629] sm:$0xff]
        %v631 = vld [vmem:[%s629 + $0x8] sm:$0xff]
        %v632 = vld [vmem:[%s629 + $0x10] sm:$0xff]
        %v633 = vld [vmem:[%s629 + $0x18] sm:$0xff]
        %v634 = vld [vmem:[%s629 + $0x20] sm:$0xff]
        %v635 = vld [vmem:[%s629 + $0x28] sm:$0xff]
        %v636 = vld [vmem:[%s629 + $0x30] sm:$0xff]
        %v637 = vld [vmem:[%s629 + $0x38] sm:$0xff]
        %638 = vmatpush.msra.mxu0 0.0
        %639 = vmatpush.msra.mxu0 0.0
        %640 = vmatpush.msra.mxu0 0.0
        %641 = vmatpush.msra.mxu0 0.0
        %642 = vmatpush.msra.mxu0 0.0
        %643 = vmatpush.msra.mxu0 0.0
        %644 = vmatpush.msra.mxu0 0.0
        %645 = vmatpush.msra.mxu0 0.0
        %646 = vmatpush.msra.mxu0 %v637
        %647 = vmatpush.msra.mxu0 %v636
        %648 = vmatpush.msra.mxu0 %v635
        %649 = vmatpush.msra.mxu0 %v634
        %650 = vmatpush.msra.mxu0 %v633
        %651 = vmatpush.msra.mxu0 %v632
        %652 = vmatpush.msra.mxu0 %v631
        %653 = vmatpush.msra.mxu0 %v630
        %654 = vmatmul.f32.gmra.mxu0 %v390
        %v655 = vpop.f32.mrf.mxu0
        %v656 = vadd.f32 0.0, %v655
        %657 = vdwg.mxu0
        %v659 = vsel %vm388, %v595, 0
        %v662 = vsel %vm388, %v598, 0
        %v665 = vsel %vm388, %v627, 0
        %667 = vmatpush.xpose.msra.mxu0 0.0
        %668 = vmatpush.xpose.msra.mxu0 0.0
        %669 = vmatpush.xpose.msra.mxu0 0.0
        %670 = vmatpush.xpose.msra.mxu0 0.0
        %671 = vmatpush.xpose.msra.mxu0 0.0
        %672 = vmatpush.xpose.msra.mxu0 0.0
        %673 = vmatpush.xpose.msra.mxu0 0.0
        %674 = vmatpush.xpose.msra.mxu0 0.0
        %675 = vmatpush.xpose.msra.mxu0 0.0
        %676 = vmatpush.xpose.msra.mxu0 0.0
        %677 = vmatpush.xpose.msra.mxu0 0.0
        %678 = vmatpush.xpose.msra.mxu0 0.0
        %679 = vmatpush.xpose.msra.mxu0 0.0
        %680 = vmatpush.xpose.msra.mxu0 0.0
        %681 = vmatpush.xpose.msra.mxu0 0.0
        %682 = vmatpush.xpose.msra.mxu0 %v665
        %683 = vmatmul.f32.gmra.mxu0 %v659
        %v684 = vpop.f32.mrf.mxu0
        %v685 = vadd.f32 0.0, %v684
        %686 = vmatmul.f32.gmra.mxu0 %v662
        %v687 = vpop.f32.mrf.mxu0
        %v688 = vadd.f32 0.0, %v687
        %689 = vdwg.mxu0
        %v690 = vmul.f32 %v685, 0.125
        %v691 = vmul.f32 %v688, 0.125
        %v692 = vsel %vm474, %v690, -inf
        %693 = vmax.xlane.f32.xlu0 %v692
        %v694 = vpop.xlane.xlu0 %693
        %v695 = vsel %vm474, %v691, -inf
        %696 = vmax.xlane.f32.xlu0 %v695
        %v697 = vpop.xlane.xlu0 %696
        %v698 = vsub.f32 %v690, %v694
        %v699 = vsub.f32 %v691, %v697
        %v700 = vmul.f32 %v698, 1.442695
        %v701 = vpow.pop %v700
        %v702 = vmul.f32 %v699, 1.442695
        %v703 = vpow.pop %v702
        %v704 = vsel %vm474, %v701, 0.0
        %705 = vadd.xlane.f32.xlu0 %v704
        %v706 = vpop.xlane.xlu0 %705
        %v707 = vsel %vm474, %v703, 0.0
        %708 = vadd.xlane.f32.xlu0 %v707
        %v709 = vpop.xlane.xlu0 %708
        %v710 = vrcp.pop %v706
        %v711 = vmul.f32 %v706, %v710
        %v712 = vsub.f32 1.0, %v711
        %v713 = vmul.f32 %v710, %v712
        %v714 = vadd.f32 %v710, %v713
        %vm715 = vweird.f32 %v706
        %vm716 = vweird.f32 %v710
        %vm717 = vmor %vm715, %vm716
        %v718 = vsel %vm717, %v710, %v714
        %v719 = vand.u32 2147483647, %v706
        %vm720 = vcmp.eq.f32.partialorder %v719, 8.507059e+37
        %v721 = vand.u32 %v706, 2147483648
        %v722 = vor.u32 1.1754944e-38, %v721
        %v723 = vsel %vm720, %v722, %v718
        %v724 = vmul.f32 %v701, %v723
        %v725 = vrcp.pop %v709
        %v726 = vmul.f32 %v709, %v725
        %v727 = vsub.f32 1.0, %v726
        %v728 = vmul.f32 %v725, %v727
        %v729 = vadd.f32 %v725, %v728
        %vm730 = vweird.f32 %v709
        %vm731 = vweird.f32 %v725
        %vm732 = vmor %vm730, %vm731
        %v733 = vsel %vm732, %v725, %v729
        %v734 = vand.u32 2147483647, %v709
        %vm735 = vcmp.eq.f32.partialorder %v734, 8.507059e+37
        %v736 = vand.u32 %v709, 2147483648
        %v737 = vor.u32 1.1754944e-38, %v736
        %v738 = vsel %vm735, %v737, %v733
        %v739 = vmul.f32 %v703, %v738
        %v741 = vsel %vm474, %v724, 0
        %v744 = vsel %vm474, %v739, 0
        %746 = vmatpush.msra.mxu0 0.0
        %747 = vmatpush.msra.mxu0 0.0
        %748 = vmatpush.msra.mxu0 0.0
        %749 = vmatpush.msra.mxu0 0.0
        %750 = vmatpush.msra.mxu0 0.0
        %751 = vmatpush.msra.mxu0 0.0
        %752 = vmatpush.msra.mxu0 0.0
        %753 = vmatpush.msra.mxu0 0.0
        %754 = vmatpush.msra.mxu0 0.0
        %755 = vmatpush.msra.mxu0 0.0
        %756 = vmatpush.msra.mxu0 0.0
        %757 = vmatpush.msra.mxu0 0.0
        %758 = vmatpush.msra.mxu0 0.0
        %759 = vmatpush.msra.mxu0 0.0
        %760 = vmatpush.msra.mxu0 0.0
        %761 = vmatpush.msra.mxu0 %v656
        %762 = vmatmul.f32.gmra.mxu0 %v741
        %v763 = vpop.f32.mrf.mxu0
        %v764 = vadd.f32 0.0, %v763
        %765 = vmatmul.f32.gmra.mxu0 %v744
        %v766 = vpop.f32.mrf.mxu0
        %v767 = vadd.f32 0.0, %v766
        %768 = vdwg.mxu0
        %s769 = scalar_lea.vmem %s5, 64
        %v770 = vld [vmem:[%s769] sm:$0xff]
        %v771 = vld [vmem:[%s769 + $0x8] sm:$0xff]
        %v772 = vld [vmem:[%s769 + $0x10] sm:$0xff]
        %v773 = vld [vmem:[%s769 + $0x18] sm:$0xff]
        %v774 = vld [vmem:[%s769 + $0x20] sm:$0xff]
        %v775 = vld [vmem:[%s769 + $0x28] sm:$0xff]
        %v776 = vld [vmem:[%s769 + $0x30] sm:$0xff]
        %v777 = vld [vmem:[%s769 + $0x38] sm:$0xff]
        %v779 = vsel %vm388, %v764, 0
        %v782 = vsel %vm388, %v767, 0
        %784 = vmatpush.msra.mxu0 0.0
        %785 = vmatpush.msra.mxu0 0.0
        %786 = vmatpush.msra.mxu0 0.0
        %787 = vmatpush.msra.mxu0 0.0
        %788 = vmatpush.msra.mxu0 0.0
        %789 = vmatpush.msra.mxu0 0.0
        %790 = vmatpush.msra.mxu0 0.0
        %791 = vmatpush.msra.mxu0 0.0
        %792 = vmatpush.msra.mxu0 %v777
        %793 = vmatpush.msra.mxu0 %v776
        %794 = vmatpush.msra.mxu0 %v775
        %795 = vmatpush.msra.mxu0 %v774
        %796 = vmatpush.msra.mxu0 %v773
        %797 = vmatpush.msra.mxu0 %v772
        %798 = vmatpush.msra.mxu0 %v771
        %799 = vmatpush.msra.mxu0 %v770
        %800 = vmatmul.f32.gmra.mxu0 %v779
        %v801 = vpop.f32.mrf.mxu0
        %v802 = vadd.f32 0.0, %v801
        %803 = vmatmul.f32.gmra.mxu0 %v782
        %v804 = vpop.f32.mrf.mxu0
        %v805 = vadd.f32 0.0, %v804
        %806 = vdwg.mxu0
        %v808 = vsel %vm388, %v547, 0
        %v811 = vsel %vm388, %v550, 0
        %813 = vmatpush.msra.mxu0 0.0
        %814 = vmatpush.msra.mxu0 0.0
        %815 = vmatpush.msra.mxu0 0.0
        %816 = vmatpush.msra.mxu0 0.0
        %817 = vmatpush.msra.mxu0 0.0
        %818 = vmatpush.msra.mxu0 0.0
        %819 = vmatpush.msra.mxu0 0.0
        %820 = vmatpush.msra.mxu0 0.0
        %821 = vmatpush.msra.mxu0 %v559
        %822 = vmatpush.msra.mxu0 %v558
        %823 = vmatpush.msra.mxu0 %v557
        %824 = vmatpush.msra.mxu0 %v556
        %825 = vmatpush.msra.mxu0 %v555
        %826 = vmatpush.msra.mxu0 %v554
        %827 = vmatpush.msra.mxu0 %v553
        %828 = vmatpush.msra.mxu0 %v552
        %829 = vmatmul.f32.gmra.mxu0 %v808
        %v830 = vpop.f32.mrf.mxu0
        %v831 = vadd.f32 %v802, %v830
        %832 = vmatmul.f32.gmra.mxu0 %v811
        %v833 = vpop.f32.mrf.mxu0
        %v834 = vadd.f32 %v805, %v833
        %835 = vdwg.mxu0
        %v836 = vld [vmem:[%s6] sm:$0x1]
        %v838 = vperm.slane %v836, 0
        %v840 = vadd.f32 %v831, %v838
        %v841 = vadd.f32 %v834, %v838
        %842 = vst [vmem:[%s337] sm:$0xff] %v840
        %843 = vst [vmem:[%s337 + $0x8] sm:$0xff] %v841
        %s844 = sand.u32 %s192, 1
        %s845 = scalar_lea.sflag [#allocation4], %s844
        %s846 = sand.u32 %s192, 1
        %s847 = smul.addr %s846, 16
        %s848 = scalar_lea.vmem [#allocation7], %s847
        // Predicated region
        $region57: #{tpu_custom_call.1} parent=47 // pred_check
          %p849 = pneg %p202
        $region58: #{tpu_custom_call.1} parent=47 // pred_check_branch
          %851 = sbr.rel (%p849) target = $region60
        $region59: #{tpu_custom_call.1} parent=47 // pred_region
          %853 = vsyncadd %s845, 0
          %s854 = smul.addr %s27, 2
          %s855 = smul.addr %s854, 8
          %s856 = scalar_lea.hbm %s7, %s855
          %s857 = sshll.u32 %s848, 4
          %s858 = int_to_ptr.vmem [resolvable:$true] %s857
          %s859 = sshll.u32 %s856, 4
          %s860 = int_to_ptr.hbm [resolvable:$true] %s859
          %865 = dma.vmem_to_hbm [thread:$0]  %s858, 256, %s860, %s845, 128, 128, 8
        $region60: #{tpu_custom_call.1} parent=47 // pred_fallthru
          _
      $region48: #{tpu_custom_call.1} parent=5 // pred_fallthru
        _
      %p866 = scmp.le.s32.totalorder 2, %s22
      // Predicated region
      $region61: #{tpu_custom_call.1} parent=5 // pred_check
        %p867 = pneg %p866
      $region62: #{tpu_custom_call.1} parent=5 // pred_check_branch
        %869 = sbr.rel (%p867) target = $region64
      $region63: #{tpu_custom_call.1} parent=5 // pred_region
        %s870 = ssub.s32 %s22, 2
        // Predicated region
        $region65: #{tpu_custom_call.1} parent=63 // pred_check
          %p871 = pneg %p208
        $region66: #{tpu_custom_call.1} parent=63 // pred_check_branch
          %873 = sbr.rel (%p871) target = $region68
        $region67: #{tpu_custom_call.1} parent=63 // pred_region
          %s874 = sand.u32 %s193, 1
          %s875 = scalar_lea.sflag [#allocation4], %s874
          %s876 = sand.u32 %s193, 1
          %s877 = smul.addr %s876, 16
          %s878 = scalar_lea.vmem [#allocation7], %s877
          %880 = dma.done %s875, 256
        $region68: #{tpu_custom_call.1} parent=63 // pred_fallthru
          _
      $region64: #{tpu_custom_call.1} parent=5 // pred_fallthru
        _
    $region6: #{tpu_custom_call.1} parent=1 // loop_footer
      %s26 = sadd.s32 1, %s22
    $region7: #{tpu_custom_call.1} parent=1 // loop_footer_branch
      %21 = sbr.rel target = $region3
    $region8: #{tpu_custom_call.1} parent=1 // loop_exit
      _
    %881 = vsyncpa [#allocation3], 1
    %s882 = scalar_lea.sflag [#allocation3], 1
    %883 = vsyncpa %s882, 1
    %884 = vsyncpa [#allocation6], 1
    %s885 = scalar_lea.sflag [#allocation6], 1
    %886 = vsyncpa %s885, 1
    %887 = vsyncpa [#allocation4], 1
    %s888 = scalar_lea.sflag [#allocation4], 1
    %889 = vsyncpa %s888, 1

</llo_original>
